<compile_context>
chip_gen: v7x
topology: tpu7x:2x2x1
jax: 0.10.0
libtpu: 0.0.40
codegen_flags: <defaults>
</compile_context>

<pallas_src>
import jax
import jax.numpy as jnp
from jax import lax
from jax.experimental import pallas as pl
from jax.experimental.pallas import tpu as pltpu

C_IN = 512
C_OUT = 11
KH = KW = 2
C_PAD = 16               # output channels padded to a sublane multiple


def _make_conv_softmax_kernel(H, W):
    HW = H * W

    def kernel(x_ref, w_ref, o_ref):
        # x_ref: (C_IN, H*W)   one image, channel-major (native NCHW order)
        # w_ref: (KH*KW*C_PAD, C_IN) stacked per-tap weights (padded rows = 0)
        # o_ref: (C_PAD, H*W)  softmax probabilities, channels on sublanes
        x = x_ref[...]
        # single MXU matmul for all 4 taps: (64, 512) @ (512, HW) -> (64, HW)
        z_all = jnp.dot(w_ref[...], x, preferred_element_type=jnp.float32)

        # conv = sum over taps of the per-tap product shifted left along the
        # flattened spatial (lane) axis by kh*W + kw.
        acc = z_all[0:C_PAD]                               # tap (0, 0), shift 0
        for t in range(1, KH * KW):
            kh, kw = divmod(t, KW)
            s = kh * W + kw
            z = z_all[t * C_PAD:(t + 1) * C_PAD]
            z_shift = jnp.concatenate(
                [z[:, s:], jnp.zeros((C_PAD, s), jnp.float32)], axis=-1)
            acc = acc + z_shift

        # Softmax over the channel (sublane) axis; only the first C_OUT rows
        # are real channels, padded rows are masked so exp() underflows to 0.
        ch = lax.broadcasted_iota(jnp.int32, acc.shape, 0)
        logits = jnp.where(ch < C_OUT, acc, jnp.finfo(jnp.float32).min)
        m = jnp.max(logits, axis=0, keepdims=True)
        e = jnp.exp(logits - m)
        denom = jnp.sum(e, axis=0, keepdims=True)
        o_ref[...] = e * pl.reciprocal(denom, approx=False)

    return kernel


def d_forward(x, weight):
    """x: (N, 512, H, W) float32 NCHW.  weight: (11, 512, 2, 2) float32 OIHW."""
    N, C, H, W = x.shape
    assert C == C_IN and H >= KH and W >= KW
    Hp, Wp = H - KH + 1, W - KW + 1
    HW = H * W

    # Free reshape: keep the input in NCHW order, flatten spatial dims.
    x_flat = x.reshape(N, C_IN, HW)

    # weight (cout, cin, kh, kw) -> stacked taps (KH*KW*C_PAD, C_IN); row
    # t*C_PAD + cout holds tap t = kh*KW + kw, padded rows are zero (tiny op).
    w_taps = jnp.transpose(weight, (2, 3, 0, 1)).reshape(KH * KW, C_OUT, C_IN)
    w_pad = jnp.zeros((KH * KW, C_PAD, C_IN), jnp.float32)
    w_pad = w_pad.at[:, :C_OUT, :].set(w_taps)
    w_mat = w_pad.reshape(KH * KW * C_PAD, C_IN)
    # NOTE: on v6e/v5e, casting x_flat / w_mat to bfloat16 (keeping the f32
    # accumulate and f32 softmax in-kernel) halves HBM traffic; kept f32 here
    # to preserve strict 1e-5 parity with the reference.

    kernel = _make_conv_softmax_kernel(H, W)

    out = pl.pallas_call(
        kernel,
        out_shape=jax.ShapeDtypeStruct((N, C_PAD, HW), jnp.float32),
        grid_spec=pltpu.PrefetchScalarGridSpec(
            num_scalar_prefetch=0,
            grid=(N,),                       # one image per grid step
            in_specs=[
                pl.BlockSpec((None, C_IN, HW), lambda n: (n, 0, 0)),
                pl.BlockSpec((KH * KW * C_PAD, C_IN), lambda n: (0, 0)),
            ],
            out_specs=pl.BlockSpec((None, C_PAD, HW), lambda n: (n, 0, 0)),
        ),
        compiler_params=pltpu.CompilerParams(
            dimension_semantics=("parallel",)),
    )(x_flat, w_mat)

    # Glue: drop padded channels and the invalid last row/column, then apply
    # the same contiguous NCHW .view(-1, 11) as PyTorch.
    y = out[:, :C_OUT, :].reshape(N, C_OUT, H, W)[:, :, :Hp, :Wp]
    return y.reshape(-1, C_OUT)


def _reference(x, weight):
    """Pure-JAX reference of the PyTorch forward."""
    conv = lax.conv_general_dilated(
        x, weight, window_strides=(1, 1), padding="VALID",
        dimension_numbers=("NCHW", "OIHW", "NCHW"))
    sm = jax.nn.softmax(conv, axis=1)                  # Softmax2d = softmax over C
    return sm.reshape(-1, C_OUT)


if __name__ == "__main__":
    key = jax.random.PRNGKey(0)
    kx, kw = jax.random.split(key)

    N, H, W = 2, 9, 9
    x = jax.random.normal(kx, (N, C_IN, H, W), dtype=jnp.float32)
    # deterministic conv weight init (kaiming-uniform-like scale)
    fan_in = C_IN * KH * KW
    bound = 1.0 / (fan_in ** 0.5)
    weight = jax.random.uniform(kw, (C_OUT, C_IN, KH, KW),
                                dtype=jnp.float32, minval=-bound, maxval=bound)

    fwd = jax.jit(d_forward)
    out = jax.block_until_ready(fwd(x, weight))

    ref = _reference(x, weight)
    assert out.shape == ref.shape, (out.shape, ref.shape)
    if not jnp.allclose(out, ref, atol=1e-5, rtol=1e-5):
        err = float(jnp.max(jnp.abs(out - ref)))
        raise AssertionError(
            f"Pallas output mismatch vs JAX reference (max|err|={err})")

    print("KERNEL_OK")
</pallas_src>

<mosaic_0001>
module attributes {stable_mosaic.version = 11 : i64} {
  func.func @kernel(%arg0: i32, %arg1: memref<1x512x81xf32, #tpu.memory_space<vmem>>, %arg2: memref<64x512xf32, #tpu.memory_space<vmem>>, %arg3: memref<1x16x81xf32, #tpu.memory_space<vmem>>) attributes {dimension_semantics = [#tpu.dimension_semantics<parallel>], iteration_bounds = array<i64: 2>, scalar_prefetch = 0 : i64, scratch_operands = 0 : i64, tpu.core_type = #tpu.core_type<tc>, window_params = [{transform_indices = @transform_0, window_bounds = array<i64: 1, 512, 81>}, {pipeline_mode = #tpu.pipeline_mode<synchronous>, transform_indices = @transform_1, window_bounds = array<i64: 64, 512>}, {transform_indices = @transform_2, window_bounds = array<i64: 1, 16, 81>}]} {
    %c0 = arith.constant 0 : index
    %c0_0 = arith.constant 0 : index
    %c0_1 = arith.constant 0 : index
    %0 = vector.load %arg1[%c0, %c0_0, %c0_1] : memref<1x512x81xf32, #tpu.memory_space<vmem>>, vector<1x512x81xf32>
    %1 = vector.shape_cast %0 : vector<1x512x81xf32> to vector<512x81xf32>
    %c0_2 = arith.constant 0 : index
    %c0_3 = arith.constant 0 : index
    %2 = vector.load %arg2[%c0_2, %c0_3] : memref<64x512xf32, #tpu.memory_space<vmem>>, vector<64x512xf32>
    %cst = arith.constant dense<0.000000e+00> : vector<64x81xf32>
    %3 = tpu.matmul %2, %1, %cst {dimension_numbers = #tpu.dot_dimension_numbers<[1], [0], [0], [1], [0, 0, 1, 1], [], []>} : vector<64x512xf32>, vector<512x81xf32>, vector<64x81xf32> -> vector<64x81xf32>
    %4 = vector.extract_strided_slice %3 {offsets = [0, 0], sizes = [16, 81], strides = [1, 1]} : vector<64x81xf32> to vector<16x81xf32>
    %5 = vector.extract_strided_slice %3 {offsets = [16, 0], sizes = [16, 81], strides = [1, 1]} : vector<64x81xf32> to vector<16x81xf32>
    %6 = vector.extract_strided_slice %5 {offsets = [0, 1], sizes = [16, 80], strides = [1, 1]} : vector<16x81xf32> to vector<16x80xf32>
    %cst_4 = arith.constant 0.000000e+00 : f32
    %7 = vector.broadcast %cst_4 : f32 to vector<16x1xf32>
    %8 = tpu.concatenate %6, %7 in 1 : vector<16x80xf32>, vector<16x1xf32> -> vector<16x81xf32>
    %9 = arith.addf %4, %8 : vector<16x81xf32>
    %10 = vector.extract_strided_slice %3 {offsets = [32, 0], sizes = [16, 81], strides = [1, 1]} : vector<64x81xf32> to vector<16x81xf32>
    %11 = vector.extract_strided_slice %10 {offsets = [0, 9], sizes = [16, 72], strides = [1, 1]} : vector<16x81xf32> to vector<16x72xf32>
    %cst_5 = arith.constant 0.000000e+00 : f32
    %12 = vector.broadcast %cst_5 : f32 to vector<16x9xf32>
    %13 = tpu.concatenate %11, %12 in 1 : vector<16x72xf32>, vector<16x9xf32> -> vector<16x81xf32>
    %14 = arith.addf %9, %13 : vector<16x81xf32>
    %15 = vector.extract_strided_slice %3 {offsets = [48, 0], sizes = [16, 81], strides = [1, 1]} : vector<64x81xf32> to vector<16x81xf32>
    %16 = vector.extract_strided_slice %15 {offsets = [0, 10], sizes = [16, 71], strides = [1, 1]} : vector<16x81xf32> to vector<16x71xf32>
    %cst_6 = arith.constant 0.000000e+00 : f32
    %17 = vector.broadcast %cst_6 : f32 to vector<16x10xf32>
    %18 = tpu.concatenate %16, %17 in 1 : vector<16x71xf32>, vector<16x10xf32> -> vector<16x81xf32>
    %19 = arith.addf %14, %18 : vector<16x81xf32>
    %20 = tpu.iota {dimensions = array<i32: 0>} : vector<16x81xi32>
    %c11_i32 = arith.constant 11 : i32
    %21 = vector.broadcast %c11_i32 : i32 to vector<16x81xi32>
    %22 = arith.cmpi slt, %20, %21 : vector<16x81xi32>
    %cst_7 = arith.constant -3.40282347E+38 : f32
    %23 = vector.broadcast %cst_7 : f32 to vector<16x81xf32>
    %24 = arith.select %22, %19, %23 : vector<16x81xi1>, vector<16x81xf32>
    %cst_8 = arith.constant dense<0xFF800000> : vector<81xf32>
    %25 = vector.multi_reduction <maximumf>, %24, %cst_8 [0] : vector<16x81xf32> to vector<81xf32>
    %26 = vector.shape_cast %25 : vector<81xf32> to vector<1x81xf32>
    %27 = vector.broadcast %26 : vector<1x81xf32> to vector<16x81xf32>
    %28 = arith.subf %24, %27 : vector<16x81xf32>
    %29 = math.exp %28 : vector<16x81xf32>
    %cst_9 = arith.constant dense<0.000000e+00> : vector<81xf32>
    %30 = vector.multi_reduction <add>, %29, %cst_9 [0] : vector<16x81xf32> to vector<81xf32>
    %31 = vector.shape_cast %30 : vector<81xf32> to vector<1x81xf32>
    %32 = tpu.reciprocal %31 : vector<1x81xf32> -> vector<1x81xf32>
    %33 = vector.broadcast %32 : vector<1x81xf32> to vector<16x81xf32>
    %34 = arith.mulf %29, %33 : vector<16x81xf32>
    %c0_10 = arith.constant 0 : index
    %c0_11 = arith.constant 0 : index
    %c0_12 = arith.constant 0 : index
    %35 = vector.load %arg3[%c0_10, %c0_11, %c0_12] : memref<1x16x81xf32, #tpu.memory_space<vmem>>, vector<1x16x81xf32>
    %36 = vector.shape_cast %35 : vector<1x16x81xf32> to vector<16x81xf32>
    %37 = vector.shape_cast %34 : vector<16x81xf32> to vector<1x16x81xf32>
    tpu.vector_store %arg3[%c0_10, %c0_11, %c0_12], %37 {strides = array<i32>} : memref<1x16x81xf32, #tpu.memory_space<vmem>>, vector<1x16x81xf32>,
    return
  }
  func.func @transform_0(%arg0: i32) -> (i32, i32, i32) {
    %c0_i32 = arith.constant 0 : i32
    %c0_i32_0 = arith.constant 0 : i32
    %c0_i32_1 = arith.constant 0 : i32
    return %arg0, %c0_i32, %c0_i32_0 : i32, i32, i32
  }
  func.func @transform_1(%arg0: i32) -> (i32, i32) {
    %c0_i32 = arith.constant 0 : i32
    %c0_i32_0 = arith.constant 0 : i32
    %c0_i32_1 = arith.constant 0 : i32
    return %c0_i32, %c0_i32_0 : i32, i32
  }
  func.func @transform_2(%arg0: i32) -> (i32, i32, i32) {
    %c0_i32 = arith.constant 0 : i32
    %c0_i32_0 = arith.constant 0 : i32
    %c0_i32_1 = arith.constant 0 : i32
    return %arg0, %c0_i32, %c0_i32_0 : i32, i32, i32
  }
}

</mosaic_0001>

<llo_original>
// kernel: d_forward.1
$region0: #{d_forward.1}
  #allocation0 [shape = 'u32[]', space=smem, size = 0x4, offset = 0x4, fixed_abs, tag = 'smem constant byte address 0x4 - core index']
  #allocation1 [shape = 'u32[144,128]{1,0:T(1,128)}', space=vmem, size = 0x12000, scoped, tag = 'internal scratch']
  %s0 = inlined_call_operand.vmem [shape: f32[2,512,81], index: 0, kind: input, shape index: {}]
  %s1 = inlined_call_operand.vmem [shape: f32[64,512], index: 1, kind: input, shape index: {}]
  %s2 = inlined_call_operand.vmem [shape: f32[2,16,81], index: 2, kind: output, shape index: {}]
  %s3 = sld [smem:[#allocation0]]
  $region41: #{d_forward.1} parent=0
    _
  %s5 = ssub.s32 1, %s3
  %s6 = scalar_select 0, %s5, %s3
  loop: start=0, step=1, limit=4
  $region2: #{d_forward.1} parent=0 // loop_pre_header
    _
  $region3: #{d_forward.1} parent=0 // loop_header
    %s8 = sphi 0, %s12
    %p9 = scmp.ge.s32.totalorder %s8, 4
    %s18 = sphi 0, %s20
    %s21 = sphi 0, %s18
    %s22 = sphi 0, %s21
    %s38 = sphi 0, %s22
    %s42 = sphi 0, %s42
    %s44 = sphi 0, %s42
    %s45 = sphi 0, %s44
    %s59 = sphi 0, %s45
    %s65 = sphi 0, %s67
    %s68 = sphi 0, %s65
    %s69 = sphi 0, %s68
    %s85 = sphi 0, %s69
  $region4: #{d_forward.1} parent=0 // loop_header_branch
    %11 = sbr.rel (%p9) target = $region8
  $region5: #{d_forward.1} parent=0 // loop_body
    %s13 = ssub.s32 %s8, 1
    %s14 = ssub.s32 %s8, 2
    %s15 = sadd.s32 %s8, 1
    %s16 = ssub.s32 %s8, %s15
    %p17 = scmp.eq.s32.totalorder %s16, 0
    %s19 = sadd.s32 %s18, 1
    %s20 = scalar_select %p17, %s18, %s19
    %p23 = pneg %p17
    %p24 = scmp.eq.s32.totalorder %s8, 1
    %p25 = por %p23, %p24
    %p26 = scmp.ne.s32.totalorder %s18, %s21
    %p27 = scmp.eq.s32.totalorder %s8, 0
    %p28 = por %p26, %p27
    %p29 = scmp.ne.s32.totalorder %s18, %s21
    %p30 = scmp.eq.s32.totalorder %s13, 1
    %p31 = por %p29, %p30
    %p32 = scmp.ne.s32.totalorder %s21, %s22
    %p33 = scmp.eq.s32.totalorder %s13, 0
    %p34 = por %p32, %p33
    %p35 = scmp.ne.s32.totalorder %s21, %s22
    %p36 = scmp.eq.s32.totalorder %s14, 1
    %p37 = por %p35, %p36
    %p39 = scmp.ne.s32.totalorder %s22, %s38
    %p40 = scmp.eq.s32.totalorder %s14, 0
    %p41 = por %p39, %p40
    %s43 = sadd.s32 %s42, 1
    %p46 = scmp.eq.s32.totalorder %s8, 1
    %p47 = scmp.ne.s32.totalorder %s42, %s44
    %p48 = scmp.eq.s32.totalorder %s8, 0
    %p49 = por %p47, %p48
    %p50 = scmp.ne.s32.totalorder %s42, %s44
    %p51 = scmp.eq.s32.totalorder %s13, 1
    %p52 = por %p50, %p51
    %p53 = scmp.ne.s32.totalorder %s44, %s45
    %p54 = scmp.eq.s32.totalorder %s13, 0
    %p55 = por %p53, %p54
    %p56 = scmp.ne.s32.totalorder %s44, %s45
    %p57 = scmp.eq.s32.totalorder %s14, 1
    %p58 = por %p56, %p57
    %p60 = scmp.ne.s32.totalorder %s45, %s59
    %p61 = scmp.eq.s32.totalorder %s14, 0
    %p62 = por %p60, %p61
    %s63 = ssub.s32 %s8, %s15
    %p64 = scmp.eq.s32.totalorder %s63, 0
    %s66 = sadd.s32 %s65, 1
    %s67 = scalar_select %p64, %s65, %s66
    %p70 = pneg %p64
    %p71 = scmp.eq.s32.totalorder %s8, 1
    %p72 = por %p70, %p71
    %p73 = scmp.ne.s32.totalorder %s65, %s68
    %p74 = scmp.eq.s32.totalorder %s8, 0
    %p75 = por %p73, %p74
    %p76 = scmp.ne.s32.totalorder %s65, %s68
    %p77 = scmp.eq.s32.totalorder %s13, 1
    %p78 = por %p76, %p77
    %p79 = scmp.ne.s32.totalorder %s68, %s69
    %p80 = scmp.eq.s32.totalorder %s13, 0
    %p81 = por %p79, %p80
    %p82 = scmp.ne.s32.totalorder %s68, %s69
    %p83 = scmp.eq.s32.totalorder %s14, 1
    %p84 = por %p82, %p83
    %p86 = scmp.ne.s32.totalorder %s69, %s85
    %p87 = scmp.eq.s32.totalorder %s14, 0
    %p88 = por %p86, %p87
    %p89 = scmp.le.s32.totalorder 1, %s8
    %p90 = scmp.lt.s32.totalorder %s8, 3
    %p91 = pnand %p89, %p90
    %p92 = pneg %p91
    // Predicated region
    $region9: #{d_forward.1} parent=5 // pred_check
      _
    $region10: #{d_forward.1} parent=5 // pred_check_branch
      %94 = sbr.rel (%p91) target = $region12
    $region11: #{d_forward.1} parent=5 // pred_region
      %s95 = ssub.s32 %s8, 1
      // Predicated region
      $region13: #{d_forward.1} parent=11 // pred_check
        %p96 = pneg %p55
      $region14: #{d_forward.1} parent=11 // pred_check_branch
        %98 = sbr.rel (%p96) target = $region16
      $region15: #{d_forward.1} parent=11 // pred_region
        _
      $region16: #{d_forward.1} parent=11 // pred_fallthru
        _
    $region12: #{d_forward.1} parent=5 // pred_fallthru
      _
    %p99 = scmp.lt.s32.totalorder %s8, 2
    // Predicated region
    $region17: #{d_forward.1} parent=5 // pred_check
      %p100 = pneg %p99
    $region18: #{d_forward.1} parent=5 // pred_check_branch
      %102 = sbr.rel (%p100) target = $region20
    $region19: #{d_forward.1} parent=5 // pred_region
      // Predicated region
      $region21: #{d_forward.1} parent=19 // pred_check
        %p103 = pneg %p28
      $region22: #{d_forward.1} parent=19 // pred_check_branch
        %105 = sbr.rel (%p103) target = $region24
      $region23: #{d_forward.1} parent=19 // pred_region
        %p106 = scmp.lt.s32.totalorder %s8, 1
        %s107 = scalar_select %p106, %s8, 1
        %s108 = smul.addr %s107, 64
        %s109 = smul.addr %s108, 8
        %s110 = scalar_lea.vmem %s0, %s109
      $region24: #{d_forward.1} parent=19 // pred_fallthru
        _
    $region20: #{d_forward.1} parent=5 // pred_fallthru
      _
    %p111 = scmp.le.s32.totalorder 1, %s8
    %p112 = scmp.lt.s32.totalorder %s8, 3
    %p113 = pnand %p111, %p112
    %p114 = pneg %p113
    // Predicated region
    $region25: #{d_forward.1} parent=5 // pred_check
      _
    $region26: #{d_forward.1} parent=5 // pred_check_branch
      %116 = sbr.rel (%p113) target = $region28
    $region27: #{d_forward.1} parent=5 // pred_region
      %s117 = ssub.s32 %s8, 1
      %p118 = scmp.lt.s32.totalorder %s13, 1
      %s119 = scalar_select %p118, %s13, 1
      %s120 = smul.addr %s119, 64
      %s121 = smul.addr %s120, 8
      %s122 = scalar_lea.vmem %s0, %s121
      %p123 = pneg %p34
      %p124 = pneg %p31
      %p125 = pneg %p55
      %p126 = pneg %p52
      %p127 = pneg %p81
      %p128 = pneg %p78
      %p129 = scmp.lt.s32.totalorder %s13, 1
      %s130 = scalar_select %p129, %s13, 1
      %s131 = smul.addr %s130, 2
      %s132 = smul.addr %s131, 8
      %s133 = scalar_lea.vmem %s2, %s132
      %p134 = scmp.lt.s32.totalorder %s13, 1
      %s135 = scalar_select %p134, %s13, 1
      %s136 = smul.addr %s135, 64
      %s137 = smul.addr %s136, 8
      %s138 = scalar_lea.vmem %s0, %s137
      %p139 = scmp.lt.s32.totalorder %s13, 1
      %s140 = scalar_select %p139, %s13, 1
      %s141 = smul.addr %s140, 2
      %s142 = smul.addr %s141, 8
      %s143 = scalar_lea.vmem %s2, %s142
      %v144 = vld [vmem:[%s138] sm:$0xff]
      %v145 = vld [vmem:[%s138 + $0x8] sm:$0xff]
      %v146 = vld [vmem:[%s138 + $0x10] sm:$0xff]
      %v147 = vld [vmem:[%s138 + $0x18] sm:$0xff]
      %v148 = vld [vmem:[%s138 + $0x20] sm:$0xff]
      %v149 = vld [vmem:[%s138 + $0x28] sm:$0xff]
      %v150 = vld [vmem:[%s138 + $0x30] sm:$0xff]
      %v151 = vld [vmem:[%s138 + $0x38] sm:$0xff]
      %v152 = vld [vmem:[%s138 + $0x40] sm:$0xff]
      %v153 = vld [vmem:[%s138 + $0x48] sm:$0xff]
      %v154 = vld [vmem:[%s138 + $0x50] sm:$0xff]
      %v155 = vld [vmem:[%s138 + $0x58] sm:$0xff]
      %v156 = vld [vmem:[%s138 + $0x60] sm:$0xff]
      %v157 = vld [vmem:[%s138 + $0x68] sm:$0xff]
      %v158 = vld [vmem:[%s138 + $0x70] sm:$0xff]
      %v159 = vld [vmem:[%s138 + $0x78] sm:$0xff]
      %v160 = vld [vmem:[%s138 + $0x80] sm:$0xff]
      %v161 = vld [vmem:[%s138 + $0x88] sm:$0xff]
      %v162 = vld [vmem:[%s138 + $0x90] sm:$0xff]
      %v163 = vld [vmem:[%s138 + $0x98] sm:$0xff]
      %v164 = vld [vmem:[%s138 + $0xa0] sm:$0xff]
      %v165 = vld [vmem:[%s138 + $0xa8] sm:$0xff]
      %v166 = vld [vmem:[%s138 + $0xb0] sm:$0xff]
      %v167 = vld [vmem:[%s138 + $0xb8] sm:$0xff]
      %v168 = vld [vmem:[%s138 + $0xc0] sm:$0xff]
      %v169 = vld [vmem:[%s138 + $0xc8] sm:$0xff]
      %v170 = vld [vmem:[%s138 + $0xd0] sm:$0xff]
      %v171 = vld [vmem:[%s138 + $0xd8] sm:$0xff]
      %v172 = vld [vmem:[%s138 + $0xe0] sm:$0xff]
      %v173 = vld [vmem:[%s138 + $0xe8] sm:$0xff]
      %v174 = vld [vmem:[%s138 + $0xf0] sm:$0xff]
      %v175 = vld [vmem:[%s138 + $0xf8] sm:$0xff]
      %v176 = vld [vmem:[%s138 + $0x100] sm:$0xff]
      %v177 = vld [vmem:[%s138 + $0x108] sm:$0xff]
      %v178 = vld [vmem:[%s138 + $0x110] sm:$0xff]
      %v179 = vld [vmem:[%s138 + $0x118] sm:$0xff]
      %v180 = vld [vmem:[%s138 + $0x120] sm:$0xff]
      %v181 = vld [vmem:[%s138 + $0x128] sm:$0xff]
      %v182 = vld [vmem:[%s138 + $0x130] sm:$0xff]
      %v183 = vld [vmem:[%s138 + $0x138] sm:$0xff]
      %v184 = vld [vmem:[%s138 + $0x140] sm:$0xff]
      %v185 = vld [vmem:[%s138 + $0x148] sm:$0xff]
      %v186 = vld [vmem:[%s138 + $0x150] sm:$0xff]
      %v187 = vld [vmem:[%s138 + $0x158] sm:$0xff]
      %v188 = vld [vmem:[%s138 + $0x160] sm:$0xff]
      %v189 = vld [vmem:[%s138 + $0x168] sm:$0xff]
      %v190 = vld [vmem:[%s138 + $0x170] sm:$0xff]
      %v191 = vld [vmem:[%s138 + $0x178] sm:$0xff]
      %v192 = vld [vmem:[%s138 + $0x180] sm:$0xff]
      %v193 = vld [vmem:[%s138 + $0x188] sm:$0xff]
      %v194 = vld [vmem:[%s138 + $0x190] sm:$0xff]
      %v195 = vld [vmem:[%s138 + $0x198] sm:$0xff]
      %v196 = vld [vmem:[%s138 + $0x1a0] sm:$0xff]
      %v197 = vld [vmem:[%s138 + $0x1a8] sm:$0xff]
      %v198 = vld [vmem:[%s138 + $0x1b0] sm:$0xff]
      %v199 = vld [vmem:[%s138 + $0x1b8] sm:$0xff]
      %v200 = vld [vmem:[%s138 + $0x1c0] sm:$0xff]
      %v201 = vld [vmem:[%s138 + $0x1c8] sm:$0xff]
      %v202 = vld [vmem:[%s138 + $0x1d0] sm:$0xff]
      %v203 = vld [vmem:[%s138 + $0x1d8] sm:$0xff]
      %v204 = vld [vmem:[%s138 + $0x1e0] sm:$0xff]
      %v205 = vld [vmem:[%s138 + $0x1e8] sm:$0xff]
      %v206 = vld [vmem:[%s138 + $0x1f0] sm:$0xff]
      %v207 = vld [vmem:[%s138 + $0x1f8] sm:$0xff]
      %v208 = vld [vmem:[%s1] sm:$0xff]
      %v209 = vld [vmem:[%s1 + $0x8] sm:$0xff]
      %v210 = vld [vmem:[%s1 + $0x10] sm:$0xff]
      %v211 = vld [vmem:[%s1 + $0x18] sm:$0xff]
      %v212 = vld [vmem:[%s1 + $0x20] sm:$0xff]
      %v213 = vld [vmem:[%s1 + $0x28] sm:$0xff]
      %v214 = vld [vmem:[%s1 + $0x30] sm:$0xff]
      %v215 = vld [vmem:[%s1 + $0x38] sm:$0xff]
      %v216 = vld [vmem:[%s1 + $0x40] sm:$0xff]
      %v217 = vld [vmem:[%s1 + $0x48] sm:$0xff]
      %v218 = vld [vmem:[%s1 + $0x50] sm:$0xff]
      %v219 = vld [vmem:[%s1 + $0x58] sm:$0xff]
      %v220 = vld [vmem:[%s1 + $0x60] sm:$0xff]
      %v221 = vld [vmem:[%s1 + $0x68] sm:$0xff]
      %v222 = vld [vmem:[%s1 + $0x70] sm:$0xff]
      %v223 = vld [vmem:[%s1 + $0x78] sm:$0xff]
      %v224 = vld [vmem:[%s1 + $0x80] sm:$0xff]
      %v225 = vld [vmem:[%s1 + $0x88] sm:$0xff]
      %v226 = vld [vmem:[%s1 + $0x90] sm:$0xff]
      %v227 = vld [vmem:[%s1 + $0x98] sm:$0xff]
      %v228 = vld [vmem:[%s1 + $0xa0] sm:$0xff]
      %v229 = vld [vmem:[%s1 + $0xa8] sm:$0xff]
      %v230 = vld [vmem:[%s1 + $0xb0] sm:$0xff]
      %v231 = vld [vmem:[%s1 + $0xb8] sm:$0xff]
      %v232 = vld [vmem:[%s1 + $0xc0] sm:$0xff]
      %v233 = vld [vmem:[%s1 + $0xc8] sm:$0xff]
      %v234 = vld [vmem:[%s1 + $0xd0] sm:$0xff]
      %v235 = vld [vmem:[%s1 + $0xd8] sm:$0xff]
      %v236 = vld [vmem:[%s1 + $0xe0] sm:$0xff]
      %v237 = vld [vmem:[%s1 + $0xe8] sm:$0xff]
      %v238 = vld [vmem:[%s1 + $0xf0] sm:$0xff]
      %v239 = vld [vmem:[%s1 + $0xf8] sm:$0xff]
      %240 = vmatprep.subr.mxu0 0.0
      %241 = vmatpush1.msra.mxu0 %v144
      %242 = vmatprep.subr.mxu0 0.0
      %243 = vmatpush1.msra.mxu0 %v145
      %244 = vmatprep.subr.mxu0 0.0
      %245 = vmatpush1.msra.mxu0 %v146
      %246 = vmatprep.subr.mxu0 0.0
      %247 = vmatpush1.msra.mxu0 %v147
      %248 = vmatprep.subr.mxu0 0.0
      %249 = vmatpush1.msra.mxu0 %v148
      %250 = vmatprep.subr.mxu0 0.0
      %251 = vmatpush1.msra.mxu0 %v149
      %252 = vmatprep.subr.mxu0 0.0
      %253 = vmatpush1.msra.mxu0 %v150
      %254 = vmatprep.subr.mxu0 0.0
      %255 = vmatpush1.msra.mxu0 %v151
      %256 = vmatprep.subr.mxu0 0.0
      %257 = vmatpush1.msra.mxu0 %v152
      %258 = vmatprep.subr.mxu0 0.0
      %259 = vmatpush1.msra.mxu0 %v153
      %260 = vmatprep.subr.mxu0 0.0
      %261 = vmatpush1.msra.mxu0 %v154
      %262 = vmatprep.subr.mxu0 0.0
      %263 = vmatpush1.msra.mxu0 %v155
      %264 = vmatprep.subr.mxu0 0.0
      %265 = vmatpush1.msra.mxu0 %v156
      %266 = vmatprep.subr.mxu0 0.0
      %267 = vmatpush1.msra.mxu0 %v157
      %268 = vmatprep.subr.mxu0 0.0
      %269 = vmatpush1.msra.mxu0 %v158
      %270 = vmatprep.subr.mxu0 0.0
      %271 = vmatpush1.msra.mxu0 %v159
      %272 = vmatprep.subr.mxu0 0.0
      %273 = vmatpush1.msra.mxu0 %v160
      %274 = vmatprep.subr.mxu0 0.0
      %275 = vmatpush1.msra.mxu0 %v161
      %276 = vmatprep.subr.mxu0 0.0
      %277 = vmatpush1.msra.mxu0 %v162
      %278 = vmatprep.subr.mxu0 0.0
      %279 = vmatpush1.msra.mxu0 %v163
      %280 = vmatprep.subr.mxu0 0.0
      %281 = vmatpush1.msra.mxu0 %v164
      %282 = vmatprep.subr.mxu0 0.0
      %283 = vmatpush1.msra.mxu0 %v165
      %284 = vmatprep.subr.mxu0 0.0
      %285 = vmatpush1.msra.mxu0 %v166
      %286 = vmatprep.subr.mxu0 0.0
      %287 = vmatpush1.msra.mxu0 %v167
      %288 = vmatprep.subr.mxu0 0.0
      %289 = vmatpush1.msra.mxu0 %v168
      %290 = vmatprep.subr.mxu0 0.0
      %291 = vmatpush1.msra.mxu0 %v169
      %292 = vmatprep.subr.mxu0 0.0
      %293 = vmatpush1.msra.mxu0 %v170
      %294 = vmatprep.subr.mxu0 0.0
      %295 = vmatpush1.msra.mxu0 %v171
      %296 = vmatprep.subr.mxu0 0.0
      %297 = vmatpush1.msra.mxu0 %v172
      %298 = vmatprep.subr.mxu0 0.0
      %299 = vmatpush1.msra.mxu0 %v173
      %300 = vmatprep.subr.mxu0 0.0
      %301 = vmatpush1.msra.mxu0 %v174
      %302 = vmatprep.subr.mxu0 0.0
      %303 = vmatpush1.msra.mxu0 %v175
      %304 = vmatprep.mubr.f32.mxu0 %v209
      %305 = vmatmul.mubr.f32.gmra.mrb[0].mxu0 %v208
      %v306 = vpop.f32.mrb[0].mxu0
      %v307 = vadd.f32 0.0, %v306
      %v308 = vpop.f32.mrb[0].mxu0
      %309 = vmatprep.mubr.f32.mxu0 %v213
      %310 = vmatmul.mubr.f32.gmra.mrb[0].mxu0 %v212
      %v311 = vpop.f32.mrb[0].mxu0
      %v312 = vadd.f32 0.0, %v311
      %v313 = vpop.f32.mrb[0].mxu0
      %314 = vmatprep.mubr.f32.mxu0 %v217
      %315 = vmatmul.mubr.f32.gmra.mrb[0].mxu0 %v216
      %v316 = vpop.f32.mrb[0].mxu0
      %v317 = vadd.f32 0.0, %v316
      %v318 = vpop.f32.mrb[0].mxu0
      %319 = vmatprep.mubr.f32.mxu0 %v221
      %320 = vmatmul.mubr.f32.gmra.mrb[0].mxu0 %v220
      %v321 = vpop.f32.mrb[0].mxu0
      %v322 = vadd.f32 0.0, %v321
      %v323 = vpop.f32.mrb[0].mxu0
      %324 = vmatprep.mubr.f32.mxu0 %v225
      %325 = vmatmul.mubr.f32.gmra.mrb[0].mxu0 %v224
      %v326 = vpop.f32.mrb[0].mxu0
      %v327 = vadd.f32 0.0, %v326
      %v328 = vpop.f32.mrb[0].mxu0
      %329 = vmatprep.mubr.f32.mxu0 %v229
      %330 = vmatmul.mubr.f32.gmra.mrb[0].mxu0 %v228
      %v331 = vpop.f32.mrb[0].mxu0
      %v332 = vadd.f32 0.0, %v331
      %v333 = vpop.f32.mrb[0].mxu0
      %334 = vmatprep.mubr.f32.mxu0 %v233
      %335 = vmatmul.mubr.f32.gmra.mrb[0].mxu0 %v232
      %v336 = vpop.f32.mrb[0].mxu0
      %v337 = vadd.f32 0.0, %v336
      %v338 = vpop.f32.mrb[0].mxu0
      %339 = vmatprep.mubr.f32.mxu0 %v237
      %340 = vmatmul.mubr.f32.gmra.mrb[0].mxu0 %v236
      %v341 = vpop.f32.mrb[0].mxu0
      %v342 = vadd.f32 0.0, %v341
      %v343 = vpop.f32.mrb[0].mxu0
      %344 = vdwg.mxu0
      %345 = vmatprep.subr.mxu0 0.0
      %346 = vmatpush1.msra.mxu0 %v176
      %347 = vmatprep.subr.mxu0 0.0
      %348 = vmatpush1.msra.mxu0 %v177
      %349 = vmatprep.subr.mxu0 0.0
      %350 = vmatpush1.msra.mxu0 %v178
      %351 = vmatprep.subr.mxu0 0.0
      %352 = vmatpush1.msra.mxu0 %v179
      %353 = vmatprep.subr.mxu0 0.0
      %354 = vmatpush1.msra.mxu0 %v180
      %355 = vmatprep.subr.mxu0 0.0
      %356 = vmatpush1.msra.mxu0 %v181
      %357 = vmatprep.subr.mxu0 0.0
      %358 = vmatpush1.msra.mxu0 %v182
      %359 = vmatprep.subr.mxu0 0.0
      %360 = vmatpush1.msra.mxu0 %v183
      %361 = vmatprep.subr.mxu0 0.0
      %362 = vmatpush1.msra.mxu0 %v184
      %363 = vmatprep.subr.mxu0 0.0
      %364 = vmatpush1.msra.mxu0 %v185
      %365 = vmatprep.subr.mxu0 0.0
      %366 = vmatpush1.msra.mxu0 %v186
      %367 = vmatprep.subr.mxu0 0.0
      %368 = vmatpush1.msra.mxu0 %v187
      %369 = vmatprep.subr.mxu0 0.0
      %370 = vmatpush1.msra.mxu0 %v188
      %371 = vmatprep.subr.mxu0 0.0
      %372 = vmatpush1.msra.mxu0 %v189
      %373 = vmatprep.subr.mxu0 0.0
      %374 = vmatpush1.msra.mxu0 %v190
      %375 = vmatprep.subr.mxu0 0.0
      %376 = vmatpush1.msra.mxu0 %v191
      %377 = vmatprep.subr.mxu0 0.0
      %378 = vmatpush1.msra.mxu0 %v192
      %379 = vmatprep.subr.mxu0 0.0
      %380 = vmatpush1.msra.mxu0 %v193
      %381 = vmatprep.subr.mxu0 0.0
      %382 = vmatpush1.msra.mxu0 %v194
      %383 = vmatprep.subr.mxu0 0.0
      %384 = vmatpush1.msra.mxu0 %v195
      %385 = vmatprep.subr.mxu0 0.0
      %386 = vmatpush1.msra.mxu0 %v196
      %387 = vmatprep.subr.mxu0 0.0
      %388 = vmatpush1.msra.mxu0 %v197
      %389 = vmatprep.subr.mxu0 0.0
      %390 = vmatpush1.msra.mxu0 %v198
      %391 = vmatprep.subr.mxu0 0.0
      %392 = vmatpush1.msra.mxu0 %v199
      %393 = vmatprep.subr.mxu0 0.0
      %394 = vmatpush1.msra.mxu0 %v200
      %395 = vmatprep.subr.mxu0 0.0
      %396 = vmatpush1.msra.mxu0 %v201
      %397 = vmatprep.subr.mxu0 0.0
      %398 = vmatpush1.msra.mxu0 %v202
      %399 = vmatprep.subr.mxu0 0.0
      %400 = vmatpush1.msra.mxu0 %v203
      %401 = vmatprep.subr.mxu0 0.0
      %402 = vmatpush1.msra.mxu0 %v204
      %403 = vmatprep.subr.mxu0 0.0
      %404 = vmatpush1.msra.mxu0 %v205
      %405 = vmatprep.subr.mxu0 0.0
      %406 = vmatpush1.msra.mxu0 %v206
      %407 = vmatprep.subr.mxu0 0.0
      %408 = vmatpush1.msra.mxu0 %v207
      %409 = vmatprep.mubr.f32.mxu0 %v211
      %410 = vmatmul.mubr.f32.gmra.mrb[0].mxu0 %v210
      %v411 = vpop.f32.mrb[0].mxu0
      %v412 = vadd.f32 %v307, %v411
      %v413 = vpop.f32.mrb[0].mxu0
      %414 = vmatprep.mubr.f32.mxu0 %v215
      %415 = vmatmul.mubr.f32.gmra.mrb[0].mxu0 %v214
      %v416 = vpop.f32.mrb[0].mxu0
      %v417 = vadd.f32 %v312, %v416
      %v418 = vpop.f32.mrb[0].mxu0
      %419 = vmatprep.mubr.f32.mxu0 %v219
      %420 = vmatmul.mubr.f32.gmra.mrb[0].mxu0 %v218
      %v421 = vpop.f32.mrb[0].mxu0
      %v422 = vadd.f32 %v317, %v421
      %v423 = vpop.f32.mrb[0].mxu0
      %424 = vmatprep.mubr.f32.mxu0 %v223
      %425 = vmatmul.mubr.f32.gmra.mrb[0].mxu0 %v222
      %v426 = vpop.f32.mrb[0].mxu0
      %v427 = vadd.f32 %v322, %v426
      %v428 = vpop.f32.mrb[0].mxu0
      %429 = vmatprep.mubr.f32.mxu0 %v227
      %430 = vmatmul.mubr.f32.gmra.mrb[0].mxu0 %v226
      %v431 = vpop.f32.mrb[0].mxu0
      %v432 = vadd.f32 %v327, %v431
      %v433 = vpop.f32.mrb[0].mxu0
      %434 = vmatprep.mubr.f32.mxu0 %v231
      %435 = vmatmul.mubr.f32.gmra.mrb[0].mxu0 %v230
      %v436 = vpop.f32.mrb[0].mxu0
      %v437 = vadd.f32 %v332, %v436
      %v438 = vpop.f32.mrb[0].mxu0
      %439 = vmatprep.mubr.f32.mxu0 %v235
      %440 = vmatmul.mubr.f32.gmra.mrb[0].mxu0 %v234
      %v441 = vpop.f32.mrb[0].mxu0
      %v442 = vadd.f32 %v337, %v441
      %v443 = vpop.f32.mrb[0].mxu0
      %444 = vmatprep.mubr.f32.mxu0 %v239
      %445 = vmatmul.mubr.f32.gmra.mrb[0].mxu0 %v238
      %v446 = vpop.f32.mrb[0].mxu0
      %v447 = vadd.f32 %v342, %v446
      %v448 = vpop.f32.mrb[0].mxu0
      %449 = vdwg.mxu0
      %452 = vrot.lane.b32.xlu0 %v422, 127
      %v453 = vpop.permute.xlu0 %452
      %454 = vrot.lane.b32.xlu0 %v427, 127
      %v455 = vpop.permute.xlu0 %454
      %vm458 = vcmask 654336
      %v459 = vsel %vm458, %v453, 0.0
      %v460 = vsel %vm458, %v455, 0.0
      %v461 = vadd.f32 %v412, %v459
      %v462 = vadd.f32 %v417, %v460
      %465 = vrot.lane.b32.xlu0 %v432, 119
      %v466 = vpop.permute.xlu0 %465
      %467 = vrot.lane.b32.xlu0 %v437, 119
      %v468 = vpop.permute.xlu0 %467
      %vm471 = vcmask 588800
      %v472 = vsel %vm471, %v466, 0.0
      %v473 = vsel %vm471, %v468, 0.0
      %v474 = vadd.f32 %v461, %v472
      %v475 = vadd.f32 %v462, %v473
      %478 = vrot.lane.b32.xlu0 %v442, 118
      %v479 = vpop.permute.xlu0 %478
      %480 = vrot.lane.b32.xlu0 %v447, 118
      %v481 = vpop.permute.xlu0 %480
      %vm484 = vcmask 580608
      %v485 = vsel %vm484, %v479, 0.0
      %v486 = vsel %vm484, %v481, 0.0
      %v487 = vadd.f32 %v474, %v485
      %v488 = vadd.f32 %v475, %v486
      %v489 = vlaneseq
      %v490 = vshrl.u32 %v489, 7
      %v491 = vadd.s32 %v490, 8
      %vm492 = vcmp.lt.s32.totalorder %v490, 11
      %vm493 = vcmp.lt.s32.totalorder %v491, 11
      %v494 = vsel %vm492, %v487, -3.4028235e+38
      %v495 = vsel %vm493, %v488, -3.4028235e+38
      %vm496 = vcmask 662528
      %v497 = vsel %vm496, %v494, -inf
      %v498 = vsel %vm496, %v495, -inf
      %v499 = vmax.f32 %v497, %v498
      %v500 = vrot.slane %v499, 4
      %v501 = vmax.f32 %v499, %v500
      %v502 = vrot.slane %v501, 2
      %v503 = vmax.f32 %v501, %v502
      %v504 = vrot.slane %v503, 1
      %v505 = vmax.f32 %v503, %v504
      %v506 = vsub.f32 %v494, %v505
      %v507 = vsub.f32 %v495, %v505
      %v508 = vmul.f32 %v506, 1.442695
      %v509 = vpow.pop %v508
      %v510 = vmul.f32 %v507, 1.442695
      %v511 = vpow.pop %v510
      %v512 = vsel %vm496, %v509, 0.0
      %v513 = vsel %vm496, %v511, 0.0
      %v514 = vadd.f32 %v512, %v513
      %v515 = vrot.slane %v514, 4
      %v516 = vadd.f32 %v514, %v515
      %v517 = vrot.slane %v516, 2
      %v518 = vadd.f32 %v516, %v517
      %v519 = vrot.slane %v518, 1
      %v520 = vadd.f32 %v518, %v519
      %v521 = vrcp.pop %v520
      %v522 = vmul.f32 %v509, %v521
      %v523 = vmul.f32 %v511, %v521
      %524 = vst.msk [vmem:[%s143] sm:$0xff] %vm496, %v522
      %525 = vst.msk [vmem:[%s143 + $0x8] sm:$0xff] %vm496, %v523
      %p526 = scmp.lt.s32.totalorder %s13, 1
      %s527 = scalar_select %p526, %s13, 1
      %s528 = smul.addr %s527, 2
      %s529 = smul.addr %s528, 8
      %s530 = scalar_lea.vmem %s2, %s529
      // Predicated region
      $region29: #{d_forward.1} parent=27 // pred_check
        %p531 = pneg %p78
      $region30: #{d_forward.1} parent=27 // pred_check_branch
        %533 = sbr.rel (%p531) target = $region32
      $region31: #{d_forward.1} parent=27 // pred_region
        _
      $region32: #{d_forward.1} parent=27 // pred_fallthru
        _
    $region28: #{d_forward.1} parent=5 // pred_fallthru
      _
    %p534 = scmp.le.s32.totalorder 2, %s8
    // Predicated region
    $region33: #{d_forward.1} parent=5 // pred_check
      %p535 = pneg %p534
    $region34: #{d_forward.1} parent=5 // pred_check_branch
      %537 = sbr.rel (%p535) target = $region36
    $region35: #{d_forward.1} parent=5 // pred_region
      %s538 = ssub.s32 %s8, 2
      // Predicated region
      $region37: #{d_forward.1} parent=35 // pred_check
        %p539 = pneg %p84
      $region38: #{d_forward.1} parent=35 // pred_check_branch
        %541 = sbr.rel (%p539) target = $region40
      $region39: #{d_forward.1} parent=35 // pred_region
        %p542 = scmp.lt.s32.totalorder %s14, 1
        %s543 = scalar_select %p542, %s14, 1
        %s544 = smul.addr %s543, 2
        %s545 = smul.addr %s544, 8
        %s546 = scalar_lea.vmem %s2, %s545
      $region40: #{d_forward.1} parent=35 // pred_fallthru
        _
    $region36: #{d_forward.1} parent=5 // pred_fallthru
      _
  $region6: #{d_forward.1} parent=0 // loop_footer
    %s12 = sadd.s32 1, %s8
  $region7: #{d_forward.1} parent=0 // loop_footer_branch
    %7 = sbr.rel target = $region3
  $region8: #{d_forward.1} parent=0 // loop_exit
    _

</llo_original>
